<compile_context>
chip_gen: v7x
topology: tpu7x:2x2x1
jax: 0.10.0
libtpu: 0.0.40
codegen_flags: <defaults>
</compile_context>

<pallas_src>
import jax
import jax.numpy as jnp
from jax.experimental import pallas as pl
from jax.experimental.pallas import tpu as pltpu

G_MIN = 0.99
G_MAX = 1.0


def _round_up(x: int, m: int) -> int:
    return ((x + m - 1) // m) * m


# ---------------------------------------------------------------- kernels ---
def _logit_rescaled(num, den):
    # logit((v - g_min)/(g_max - g_min)) == log((v - g_min)/(g_max - v)).
    # approx EUP reciprocal + one Newton step (VPU) instead of an exact divide.
    r0 = pl.reciprocal(den, approx=True)
    r = r0 * (2.0 - den * r0)
    return jnp.log(num * r)


def _kernel_delays_compressed(y_ref, d_ref, o_ref):
    y = y_ref[...]
    inv_d = 1.0 / d_ref[...]                    # (1, TN) row — tiny exact divide
    v = jnp.exp(inv_d * jnp.log(y))             # y ** (1/delays) on the EUP
    o_ref[...] = _logit_rescaled(v - G_MIN, G_MAX - v)


def _kernel_delays_raw(y_ref, d_ref, o_ref):
    y = y_ref[...]
    inv_d = 1.0 / d_ref[...]
    o_ref[...] = jnp.exp(inv_d * jnp.log(y))    # y ** (1/delays)


def _kernel_nodelays_compressed(y_ref, o_ref):
    y = y_ref[...]
    o_ref[...] = _logit_rescaled(y - G_MIN, G_MAX - y)


# ---------------------------------------------------------------- wrapper ---
def inverse_map_gamma_forward(y, delays=None, is_compressed=True,
                              tile_b=512, tile_n=2048, small_jnp_bytes=0):
    """Pallas implementation of inverse_map_gamma.forward.

    y: [B, N] float32.  delays: None, scalar, or [N].
    small_jnp_bytes: if > 0 and y is smaller than this, use a plain jnp
      (XLA-fused) path instead of a kernel launch. Disabled by default.
    """
    y = jnp.asarray(y, jnp.float32)
    B, N = y.shape

    if (not is_compressed) and delays is None:
        return y  # identity branch of the module — no kernel needed.

    has_delays = delays is not None
    if has_delays:
        d_row = jnp.broadcast_to(
            jnp.asarray(delays, jnp.float32), (N,)).reshape(1, N)

    # Optional tiny-input fast path: realistic FDN shapes (a few KiB) are
    # dominated by launch overhead — a fused XLA chain is strictly faster.
    if small_jnp_bytes and y.size * 4 <= small_jnp_bytes:
        v = y ** (1.0 / d_row) if has_delays else y
        return jnp.log((v - G_MIN) / (G_MAX - v)) if is_compressed else v

    # ---- tile selection (no padding; Pallas masks partial edge blocks) ----
    B8, N128 = _round_up(B, 8), _round_up(N, 128)
    TB = min(_round_up(max(tile_b, 8), 8), B8)
    TN = min(_round_up(max(tile_n, 128), 128), N128)

    # Generation-aware VMEM guard: double-buffered in+out tiles (+delays row)
    # must stay under ~48 MiB so large user tiles don't OOM on v7x (64 MiB).
    def _footprint(tb, tn):
        return 2 * 2 * tb * tn * 4 + 2 * tn * 4
    MAX_FOOT = 48 << 20
    while _footprint(TB, TN) > MAX_FOOT and TN > 128:
        TN = max(128, _round_up(TN // 2, 128))
    while _footprint(TB, TN) > MAX_FOOT and TB > 8:
        TB = max(8, _round_up(TB // 2, 8))

    # Ensure >= 2 grid steps when possible so v7x's second TC gets work.
    if pl.cdiv(B, TB) * pl.cdiv(N, TN) == 1:
        if B8 >= 16:
            TB = max(8, _round_up(B8 // 2, 8))
        elif N128 >= 256:
            TN = max(128, _round_up(N128 // 2, 128))

    grid = (pl.cdiv(N, TN), pl.cdiv(B, TB))     # outer=n so delays row is resident
    y_spec = pl.BlockSpec((TB, TN), lambda j, i: (i, j))
    o_spec = pl.BlockSpec((TB, TN), lambda j, i: (i, j))
    d_spec = pl.BlockSpec((1, TN), lambda j, i: (0, j))   # changes on outer axis only

    vmem_limit = min(48 << 20,
                     max(16 << 20, int(_footprint(TB, TN) * 1.25) + (1 << 20)))
    cparams = pltpu.CompilerParams(
        dimension_semantics=("parallel", "parallel"),
        vmem_limit_bytes=vmem_limit)

    out_shape = jax.ShapeDtypeStruct((B, N), jnp.float32)

    if has_delays:
        kernel = _kernel_delays_compressed if is_compressed else _kernel_delays_raw
        return pl.pallas_call(
            kernel,
            out_shape=out_shape,
            grid=grid,
            in_specs=[y_spec, d_spec],
            out_specs=o_spec,
            compiler_params=cparams,
        )(y, d_row)

    # is_compressed=True, delays=None — no delays argument / DMA at all.
    return pl.pallas_call(
        _kernel_nodelays_compressed,
        out_shape=out_shape,
        grid=grid,
        in_specs=[y_spec],
        out_specs=o_spec,
        compiler_params=cparams,
    )(y)


# -------------------------------------------------------------- reference ---
def _reference(y, delays=None, is_compressed=True):
    y = jnp.asarray(y, jnp.float32)
    if is_compressed:
        if delays is None:
            sig = (y - G_MIN) / (G_MAX - G_MIN)
        else:
            sig = (y ** (1.0 / delays) - G_MIN) / (G_MAX - G_MIN)
        return jnp.log(sig / (1.0 - sig))
    elif delays is None:
        return y
    else:
        return y ** (1.0 / delays)


if __name__ == "__main__":
    key = jax.random.PRNGKey(0)
    B, N = 8, 128                                          # batch x num delay lines

    k1, k2 = jax.random.split(key)
    # Deterministic delay-line lengths (samples), as in an FDN.
    delays = jnp.round(
        jax.random.uniform(k1, (N,), jnp.float32, 500.0, 3000.0))
    # Per-delay-line gamma in (g_min, g_max) so the logit argument stays in (0, 1).
    gamma = jax.random.uniform(k2, (B, N), jnp.float32, 0.992, 0.999)
    # y = gamma ** delays  (exactly what the forward inverts).
    y = gamma ** delays[None, :]

    # 1) compressed, with delays
    out = jax.block_until_ready(inverse_map_gamma_forward(y, delays, True))
    ref = _reference(y, delays, True)
    assert out.shape == ref.shape and out.dtype == ref.dtype
    assert jnp.allclose(out, ref, rtol=1e-4, atol=1e-4), (
        float(jnp.max(jnp.abs(out - ref))))

    # 2) compressed, delays=None (2-arg kernel, no dummy DMA)
    y2 = jax.random.uniform(jax.random.PRNGKey(1), (B, N), jnp.float32, 0.991, 0.999)
    out2 = jax.block_until_ready(inverse_map_gamma_forward(y2, None, True))
    ref2 = _reference(y2, None, True)
    assert jnp.allclose(out2, ref2, rtol=1e-4, atol=1e-4)

    # 3) not compressed, with delays (pure y**(1/d) kernel)
    out3 = jax.block_until_ready(inverse_map_gamma_forward(y, delays, False))
    ref3 = _reference(y, delays, False)
    assert jnp.allclose(out3, ref3, rtol=1e-4, atol=1e-4)

    # 4) non-(8,128)-aligned shape: no padding — exercises partial edge blocks
    #    and the >=2-step grid split (B rounds to 24 -> two 16-row tiles).
    Bo, No = 20, 200
    k3, k4 = jax.random.split(jax.random.PRNGKey(2))
    delays_o = jnp.round(jax.random.uniform(k3, (No,), jnp.float32, 500.0, 3000.0))
    gamma_o = jax.random.uniform(k4, (Bo, No), jnp.float32, 0.992, 0.999)
    y_o = gamma_o ** delays_o[None, :]
    out4 = jax.block_until_ready(inverse_map_gamma_forward(y_o, delays_o, True))
    ref4 = _reference(y_o, delays_o, True)
    assert out4.shape == ref4.shape
    assert jnp.allclose(out4, ref4, rtol=1e-4, atol=1e-4)

    print("KERNEL_OK")
</pallas_src>

<mosaic_0001>
module attributes {stable_mosaic.version = 11 : i64} {
  func.func @_kernel_delays_compressed(%arg0: i32, %arg1: i32, %arg2: memref<8x128xf32, #tpu.memory_space<vmem>>, %arg3: memref<1x128xf32, #tpu.memory_space<vmem>>, %arg4: memref<8x128xf32, #tpu.memory_space<vmem>>) attributes {dimension_semantics = [#tpu.dimension_semantics<parallel>, #tpu.dimension_semantics<parallel>], iteration_bounds = array<i64: 1, 1>, scalar_prefetch = 0 : i64, scratch_operands = 0 : i64, tpu.core_type = #tpu.core_type<tc>, window_params = [{transform_indices = @transform_0, window_bounds = array<i64: 8, 128>}, {transform_indices = @transform_1, window_bounds = array<i64: 1, 128>}, {transform_indices = @transform_2, window_bounds = array<i64: 8, 128>}]} {
    %c0 = arith.constant 0 : index
    %c0_0 = arith.constant 0 : index
    %0 = vector.load %arg2[%c0, %c0_0] : memref<8x128xf32, #tpu.memory_space<vmem>>, vector<8x128xf32>
    %c0_1 = arith.constant 0 : index
    %c0_2 = arith.constant 0 : index
    %1 = vector.load %arg3[%c0_1, %c0_2] : memref<1x128xf32, #tpu.memory_space<vmem>>, vector<1x128xf32>
    %cst = arith.constant 1.000000e+00 : f32
    %2 = vector.broadcast %cst : f32 to vector<1x128xf32>
    %3 = arith.divf %2, %1 : vector<1x128xf32>
    %4 = math.log %0 : vector<8x128xf32>
    %5 = vector.broadcast %3 : vector<1x128xf32> to vector<8x128xf32>
    %6 = arith.mulf %5, %4 : vector<8x128xf32>
    %7 = math.exp %6 : vector<8x128xf32>
    %cst_3 = arith.constant 9.900000e-01 : f32
    %8 = vector.broadcast %cst_3 : f32 to vector<8x128xf32>
    %9 = arith.subf %7, %8 : vector<8x128xf32>
    %cst_4 = arith.constant 1.000000e+00 : f32
    %10 = vector.broadcast %cst_4 : f32 to vector<8x128xf32>
    %11 = arith.subf %10, %7 : vector<8x128xf32>
    %12 = tpu.reciprocal %11 {approx = true} : vector<8x128xf32> -> vector<8x128xf32>
    %13 = arith.mulf %11, %12 : vector<8x128xf32>
    %cst_5 = arith.constant 2.000000e+00 : f32
    %14 = vector.broadcast %cst_5 : f32 to vector<8x128xf32>
    %15 = arith.subf %14, %13 : vector<8x128xf32>
    %16 = arith.mulf %12, %15 : vector<8x128xf32>
    %17 = arith.mulf %9, %16 : vector<8x128xf32>
    %18 = math.log %17 : vector<8x128xf32>
    %c0_6 = arith.constant 0 : index
    %c0_7 = arith.constant 0 : index
    %19 = vector.load %arg4[%c0_6, %c0_7] : memref<8x128xf32, #tpu.memory_space<vmem>>, vector<8x128xf32>
    tpu.vector_store %arg4[%c0_6, %c0_7], %18 {strides = array<i32>} : memref<8x128xf32, #tpu.memory_space<vmem>>, vector<8x128xf32>,
    return
  }
  func.func @transform_0(%arg0: i32, %arg1: i32) -> (i32, i32) {
    %c0_i32 = arith.constant 0 : i32
    return %arg1, %arg0 : i32, i32
  }
  func.func @transform_1(%arg0: i32, %arg1: i32) -> (i32, i32) {
    %c0_i32 = arith.constant 0 : i32
    %c0_i32_0 = arith.constant 0 : i32
    return %c0_i32, %arg0 : i32, i32
  }
  func.func @transform_2(%arg0: i32, %arg1: i32) -> (i32, i32) {
    %c0_i32 = arith.constant 0 : i32
    return %arg1, %arg0 : i32, i32
  }
}

</mosaic_0001>

<llo_original>
// kernel: tpu_custom_call.1
$region0: #{tpu_custom_call.1}
  #allocation0 [shape = 'u32[]', space=smem, size = 0x4, offset = 0x4, fixed_abs, tag = 'smem constant byte address 0x4 - core index']
  #allocation1 [shape = 'u32[144,128]{1,0:T(1,128)}', space=vmem, size = 0x12000, scoped, tag = 'internal scratch']
  %s0 = inlined_call_operand.hbm [shape: f32[8,128], index: 0, kind: input, shape index: {}]
  %s1 = inlined_call_operand.vmem [shape: f32[1,128], index: 1, kind: input, shape index: {}]
  %s2 = inlined_call_operand.hbm [shape: f32[8,128], index: 2, kind: output, shape index: {}]
  %s3 = sld [smem:[#allocation0]]
  $region22: #{tpu_custom_call.1} parent=0
    _
  %s5 = ssub.s32 1, %s3
  %s6 = scalar_select 0, %s5, %s3
  $region1: #{tpu_custom_call.1} parent=0
    #allocation2 [shape = 'u8[4096]{0}', space=vmem, size = 0x1000, scoped, tag = 'input window, operand 0, single buffered']
    #allocation3 [shape = 's32[1]{0}', space=sflag, size = 0x4, scoped, tag = 'scoped memory for tpu_custom_call.1']
    #allocation4 [shape = 's32[1]{0}', space=sflag, size = 0x4, scoped, tag = 'scoped memory for tpu_custom_call.1']
    #allocation5 [shape = 'u8[4096]{0}', space=vmem, size = 0x1000, scoped, tag = 'output window, operand 0, single buffered']
    %7 = vsyncpa [#allocation3], 0
    %8 = vsyncpa [#allocation4], 0
    // Predicated region
    $region2: #{tpu_custom_call.1} parent=1 // pred_check
      _
    $region3: #{tpu_custom_call.1} parent=1 // pred_check_branch
      %10 = sbr.rel (0) target = $region5
    $region4: #{tpu_custom_call.1} parent=1 // pred_region
      %s12 = ssub.s32 128, 128
      %13 = vsyncadd [#allocation3], %s12
      %s15 = sshll.u32 [#allocation2], 4
      %s16 = int_to_ptr.vmem [resolvable:$true] %s15
      %18 = dma.hbm_to_vmem [thread:$0]  %s0, 128, %s16, [#allocation3]
    $region5: #{tpu_custom_call.1} parent=1 // pred_fallthru
      _
    // Predicated region
    $region6: #{tpu_custom_call.1} parent=1 // pred_check
      _
    $region7: #{tpu_custom_call.1} parent=1 // pred_check_branch
      %20 = sbr.rel (0) target = $region9
    $region8: #{tpu_custom_call.1} parent=1 // pred_region
      _
    $region9: #{tpu_custom_call.1} parent=1 // pred_fallthru
      _
    // Predicated region
    $region10: #{tpu_custom_call.1} parent=1 // pred_check
      _
    $region11: #{tpu_custom_call.1} parent=1 // pred_check_branch
      %22 = sbr.rel (0) target = $region13
    $region12: #{tpu_custom_call.1} parent=1 // pred_region
      %23 = dma.done [#allocation3], 128
    $region13: #{tpu_custom_call.1} parent=1 // pred_fallthru
      _
    %v24 = vld [vmem:[#allocation2] sm:$0xff]
    %v25 = vld [vmem:[%s1] sm:$0x1]
    %v26 = vrcp.pop %v25
    %v27 = vmul.f32 1.0, %v26
    %v28 = vlog2.pop %v24
    %v29 = vmul.f32 %v28, 0.6931472
    %v31 = vlaneseq
    %v32 = vshrl.u32 %v31, 7
    %v33 = vsub.s32 0, %v32
    %v34 = vrot.slane %v27, %v33
    %v36 = vmul.f32 %v34, %v29
    %v37 = vmul.f32 %v36, 1.442695
    %v38 = vpow.pop %v37
    %v39 = vsub.f32 %v38, 0.99
    %v40 = vsub.f32 1.0, %v38
    %v41 = vrcp.pop %v40
    %v42 = vmul.f32 %v40, %v41
    %v43 = vsub.f32 2.0, %v42
    %v44 = vmul.f32 %v41, %v43
    %v45 = vmul.f32 %v39, %v44
    %v46 = vlog2.pop %v45
    %v47 = vmul.f32 %v46, 0.6931472
    %48 = vst [vmem:[#allocation5] sm:$0xff] %v47
    // Predicated region
    $region14: #{tpu_custom_call.1} parent=1 // pred_check
      _
    $region15: #{tpu_custom_call.1} parent=1 // pred_check_branch
      %50 = sbr.rel (0) target = $region17
    $region16: #{tpu_custom_call.1} parent=1 // pred_region
      %s52 = ssub.s32 128, 128
      %53 = vsyncadd [#allocation4], %s52
      %s55 = sshll.u32 [#allocation5], 4
      %s56 = int_to_ptr.vmem [resolvable:$true] %s55
      %58 = dma.vmem_to_hbm [thread:$0]  %s56, 128, %s2, [#allocation4]
    $region17: #{tpu_custom_call.1} parent=1 // pred_fallthru
      _
    // Predicated region
    $region18: #{tpu_custom_call.1} parent=1 // pred_check
      _
    $region19: #{tpu_custom_call.1} parent=1 // pred_check_branch
      %60 = sbr.rel (0) target = $region21
    $region20: #{tpu_custom_call.1} parent=1 // pred_region
      %61 = dma.done [#allocation4], 128
    $region21: #{tpu_custom_call.1} parent=1 // pred_fallthru
      _
    %62 = vsyncpa [#allocation3], 1
    %63 = vsyncpa [#allocation4], 1

</llo_original>
